<compile_context>
chip_gen: v5e
topology: v5e:2x2
jax: 0.10.0
libtpu: 0.0.40
codegen_flags: <defaults>
</compile_context>

<pallas_src>
import jax
import jax.numpy as jnp
from jax.experimental import pallas as pl
from jax.experimental.pallas import tpu as pltpu


_LANE = 128
# Per-operand byte threshold below which the grid machinery is pure overhead
# (~0.35 us per grid step): use a single ungridded block instead.
_SMALL_BYTES = 2 << 20  # 2 MiB


def _add_kernel(a_ref, b_ref, o_ref):
    o_ref[...] = a_ref[...] + b_ref[...]


def _sublane(itemsize: int) -> int:
    # f32 -> 8 sublanes, bf16/f16 -> 16, int8/fp8 -> 32.
    return max(8, 32 // max(1, itemsize))


def _round_up(x: int, m: int) -> int:
    return ((x + m - 1) // m) * m


def adder(a: jax.Array, b: jax.Array) -> jax.Array:
    """Elementwise a + b (PyTorch `Adder.forward`) via a Pallas TPU kernel.

    Broadcasting / dtype promotion is plain-JAX glue; the streaming add runs on
    a lane-dense 2-D slab so every vector load/store is full width.
    """
    out_dtype = jnp.result_type(a.dtype, b.dtype)
    a = a.astype(out_dtype)
    b = b.astype(out_dtype)
    a, b = jnp.broadcast_arrays(a, b)
    orig_shape = a.shape

    total = a.size
    if total == 0:
        return jnp.zeros(orig_shape, out_dtype)

    itemsize = jnp.dtype(out_dtype).itemsize
    a_flat = a.reshape(-1)
    b_flat = b.reshape(-1)

    # ------------------------------------------------------------------ small
    if total * itemsize <= _SMALL_BYTES:
        C = _LANE
        padded = _round_up(total, C)
        if padded != total:
            a_flat = jnp.pad(a_flat, (0, padded - total))
            b_flat = jnp.pad(b_flat, (0, padded - total))
        R = padded // C
        out2 = pl.pallas_call(
            _add_kernel,
            out_shape=jax.ShapeDtypeStruct((R, C), out_dtype),
        )(a_flat.reshape(R, C), b_flat.reshape(R, C))
        out_flat = out2.reshape(-1)
        if padded != total:
            out_flat = out_flat[:total]
        return out_flat.reshape(orig_shape)

    # ------------------------------------------------------------------ large
    # Prefer a lane-dense width that divides the element count (no pad copy).
    C = 1024
    for cand in (1024, 512, 256, 128):
        if total % cand == 0:
            C = cand
            break
    padded = _round_up(total, C)
    if padded != total:
        a_flat = jnp.pad(a_flat, (0, padded - total))
        b_flat = jnp.pad(b_flat, (0, padded - total))
    R = padded // C
    a2 = a_flat.reshape(R, C)
    b2 = b_flat.reshape(R, C)

    sub = _sublane(itemsize)
    # ~4 MiB tiles: 1024x1024 for f32, 2048x1024 for bf16, etc.
    target_tile_bytes = 4 << 20
    tm = max(sub, target_tile_bytes // (C * itemsize))
    tm = min(_round_up(R, sub), _round_up(tm, sub))

    grid = (pl.cdiv(R, tm),)

    # 3 operands x 2 pipeline buffers x tile bytes, 2x headroom, capped safely
    # below v7x's 64 MiB physical VMEM.
    tile_bytes = tm * C * itemsize
    vmem_limit = int(min(56 << 20, max(32 << 20, 2 * 6 * tile_bytes)))

    out2 = pl.pallas_call(
        _add_kernel,
        out_shape=jax.ShapeDtypeStruct((R, C), out_dtype),
        grid=grid,
        in_specs=[
            pl.BlockSpec((tm, C), lambda i: (i, 0)),
            pl.BlockSpec((tm, C), lambda i: (i, 0)),
        ],
        out_specs=pl.BlockSpec((tm, C), lambda i: (i, 0)),
        compiler_params=pltpu.CompilerParams(
            dimension_semantics=("parallel",),
            vmem_limit_bytes=vmem_limit,
        ),
    )(a2, b2)

    out_flat = out2.reshape(-1)
    if padded != total:
        out_flat = out_flat[:total]
    return out_flat.reshape(orig_shape)


if __name__ == "__main__":
    key = jax.random.PRNGKey(0)
    k1, k2, k3, k4 = jax.random.split(key, 4)

    # Small demo shape consistent with the module (hits the single-block path).
    shape = (2, 4, 16, 16)
    a = jax.random.normal(k1, shape, dtype=jnp.float32)
    b = jax.random.normal(k2, shape, dtype=jnp.float32)
    out = adder(a, b)
    jax.block_until_ready(out)
    assert jnp.allclose(out, a + b, atol=1e-6), "mismatch vs reference (small path)"

    # Exercise the tiled lane-dense path as well (correctness sanity check).
    big_shape = (2048, 2048)
    ab = jax.random.normal(k3, big_shape, dtype=jnp.float32)
    bb = jax.random.normal(k4, big_shape, dtype=jnp.float32)
    out_big = adder(ab, bb)
    jax.block_until_ready(out_big)
    assert jnp.allclose(out_big, ab + bb, atol=1e-6), "mismatch vs reference (tiled path)"

    print("KERNEL_OK")
</pallas_src>

<mosaic_0001>
module attributes {stable_mosaic.version = 11 : i64} {
  func.func @_add_kernel(%arg0: memref<16x128xf32, #tpu.memory_space<vmem>>, %arg1: memref<16x128xf32, #tpu.memory_space<vmem>>, %arg2: memref<16x128xf32, #tpu.memory_space<vmem>>) attributes {dimension_semantics = [], scalar_prefetch = 0 : i64, scratch_operands = 0 : i64, tpu.core_type = #tpu.core_type<tc>} {
    %c0 = arith.constant 0 : index
    %c0_0 = arith.constant 0 : index
    %0 = vector.load %arg0[%c0, %c0_0] : memref<16x128xf32, #tpu.memory_space<vmem>>, vector<16x128xf32>
    %c0_1 = arith.constant 0 : index
    %c0_2 = arith.constant 0 : index
    %1 = vector.load %arg1[%c0_1, %c0_2] : memref<16x128xf32, #tpu.memory_space<vmem>>, vector<16x128xf32>
    %2 = arith.addf %0, %1 : vector<16x128xf32>
    %c0_3 = arith.constant 0 : index
    %c0_4 = arith.constant 0 : index
    %3 = vector.load %arg2[%c0_3, %c0_4] : memref<16x128xf32, #tpu.memory_space<vmem>>, vector<16x128xf32>
    tpu.vector_store %arg2[%c0_3, %c0_4], %2 {strides = array<i32>} : memref<16x128xf32, #tpu.memory_space<vmem>>, vector<16x128xf32>,
    return
  }
}

</mosaic_0001>

<llo_original>
// kernel: tpu_custom_call.1
$region0: #{tpu_custom_call.1}
  #allocation0 [shape = 'u32[]', space=smem, size = 0x4, offset = 0x4, fixed_abs, tag = 'smem constant byte address 0x4 - core index']
  #allocation1 [shape = 'u32[72,128]{1,0:T(1,128)}', space=vmem, size = 0x9000, scoped, tag = 'internal scratch']
  %s0 = inlined_call_operand.hbm [shape: f32[16,128], index: 0, kind: input, shape index: {}]
  %s1 = inlined_call_operand.hbm [shape: f32[16,128], index: 1, kind: input, shape index: {}]
  %s2 = inlined_call_operand.hbm [shape: f32[16,128], index: 2, kind: output, shape index: {}]
  %s3 = sld [smem:[#allocation0]]
  $region26: #{tpu_custom_call.1} parent=0
    _
  %s5 = ssub.s32 1, %s3
  %s6 = scalar_select 0, %s5, %s3
  $region1: #{tpu_custom_call.1} parent=0
    #allocation2 [shape = 'u8[8192]{0}', space=vmem, size = 0x2000, scoped, tag = 'input window, operand 0, single buffered']
    #allocation3 [shape = 's32[1]{0}', space=sflag, size = 0x4, scoped, tag = 'scoped memory for tpu_custom_call.1']
    #allocation4 [shape = 's32[1]{0}', space=sflag, size = 0x4, scoped, tag = 'scoped memory for tpu_custom_call.1']
    #allocation5 [shape = 'u8[8192]{0}', space=vmem, size = 0x2000, scoped, tag = 'input window, operand 1, single buffered']
    #allocation6 [shape = 's32[1]{0}', space=sflag, size = 0x4, scoped, tag = 'scoped memory for tpu_custom_call.1']
    #allocation7 [shape = 'u8[8192]{0}', space=vmem, size = 0x2000, scoped, tag = 'output window, operand 0, single buffered']
    %7 = vsyncpa [#allocation3], 0
    %8 = vsyncpa [#allocation6], 0
    %9 = vsyncpa [#allocation4], 0
    // Predicated region
    $region2: #{tpu_custom_call.1} parent=1 // pred_check
      _
    $region3: #{tpu_custom_call.1} parent=1 // pred_check_branch
      %11 = sbr.rel (0) target = $region5
    $region4: #{tpu_custom_call.1} parent=1 // pred_region
      %13 = vsyncadd [#allocation3], 0
      %s14 = sshll.u32 %s0, 4
      %s15 = int_to_ptr.hbm [resolvable:$true] %s14
      %s16 = sshll.u32 [#allocation2], 4
      %s17 = int_to_ptr.vmem [resolvable:$true] %s16
      %22 = dma.hbm_to_vmem [thread:$0]  %s15, 256, %s17, [#allocation3], 128, 128, 8
    $region5: #{tpu_custom_call.1} parent=1 // pred_fallthru
      _
    // Predicated region
    $region6: #{tpu_custom_call.1} parent=1 // pred_check
      _
    $region7: #{tpu_custom_call.1} parent=1 // pred_check_branch
      %24 = sbr.rel (0) target = $region9
    $region8: #{tpu_custom_call.1} parent=1 // pred_region
      %26 = vsyncadd [#allocation6], 0
      %s27 = sshll.u32 %s1, 4
      %s28 = int_to_ptr.hbm [resolvable:$true] %s27
      %s29 = sshll.u32 [#allocation5], 4
      %s30 = int_to_ptr.vmem [resolvable:$true] %s29
      %35 = dma.hbm_to_vmem [thread:$0]  %s28, 256, %s30, [#allocation6], 128, 128, 8
    $region9: #{tpu_custom_call.1} parent=1 // pred_fallthru
      _
    // Predicated region
    $region10: #{tpu_custom_call.1} parent=1 // pred_check
      _
    $region11: #{tpu_custom_call.1} parent=1 // pred_check_branch
      %37 = sbr.rel (0) target = $region13
    $region12: #{tpu_custom_call.1} parent=1 // pred_region
      %39 = dma.done [#allocation3], 256
    $region13: #{tpu_custom_call.1} parent=1 // pred_fallthru
      _
    // Predicated region
    $region14: #{tpu_custom_call.1} parent=1 // pred_check
      _
    $region15: #{tpu_custom_call.1} parent=1 // pred_check_branch
      %41 = sbr.rel (0) target = $region17
    $region16: #{tpu_custom_call.1} parent=1 // pred_region
      %43 = dma.done [#allocation6], 256
    $region17: #{tpu_custom_call.1} parent=1 // pred_fallthru
      _
    %v44 = vld [vmem:[#allocation2] sm:$0xff]
    %v45 = vld [vmem:[#allocation2 + $0x8] sm:$0xff]
    %v46 = vld [vmem:[#allocation5] sm:$0xff]
    %v47 = vld [vmem:[#allocation5 + $0x8] sm:$0xff]
    %v48 = vadd.f32 %v44, %v46
    %v49 = vadd.f32 %v45, %v47
    %50 = vst [vmem:[#allocation7] sm:$0xff] %v48
    %51 = vst [vmem:[#allocation7 + $0x8] sm:$0xff] %v49
    // Predicated region
    $region18: #{tpu_custom_call.1} parent=1 // pred_check
      _
    $region19: #{tpu_custom_call.1} parent=1 // pred_check_branch
      %53 = sbr.rel (0) target = $region21
    $region20: #{tpu_custom_call.1} parent=1 // pred_region
      %55 = vsyncadd [#allocation4], 0
      %s56 = sshll.u32 [#allocation7], 4
      %s57 = int_to_ptr.vmem [resolvable:$true] %s56
      %s58 = sshll.u32 %s2, 4
      %s59 = int_to_ptr.hbm [resolvable:$true] %s58
      %64 = dma.vmem_to_hbm [thread:$0]  %s57, 256, %s59, [#allocation4], 128, 128, 8
    $region21: #{tpu_custom_call.1} parent=1 // pred_fallthru
      _
    // Predicated region
    $region22: #{tpu_custom_call.1} parent=1 // pred_check
      _
    $region23: #{tpu_custom_call.1} parent=1 // pred_check_branch
      %66 = sbr.rel (0) target = $region25
    $region24: #{tpu_custom_call.1} parent=1 // pred_region
      %68 = dma.done [#allocation4], 256
    $region25: #{tpu_custom_call.1} parent=1 // pred_fallthru
      _
    %69 = vsyncpa [#allocation3], 1
    %70 = vsyncpa [#allocation6], 1
    %71 = vsyncpa [#allocation4], 1

</llo_original>
